<compile_context>
chip_gen: v5e
topology: v5e:2x2
jax: 0.10.0
libtpu: 0.0.40
codegen_flags: <defaults>
</compile_context>

<pallas_src>
import functools
import math

import jax
import jax.numpy as jnp
from jax import lax
from jax.experimental import pallas as pl
from jax.experimental.pallas import tpu as pltpu


_VMEM_LIMIT_BYTES = 48 * 1024 * 1024  # headroom under v7x's 64 MiB physical VMEM


# ---------------------------------------------------------------------------
# Tiling helper
# ---------------------------------------------------------------------------
def _pick_tile(n, max_tile):
    """Largest tile <= max_tile that divides n, preferring multiples of 128, then 8."""
    if n <= max_tile:
        return n
    start128 = max_tile - (max_tile % 128)
    for t in range(start128, 0, -128):
        if n % t == 0:
            return t
    start8 = max_tile - (max_tile % 8)
    for t in range(start8, 0, -8):
        if n % t == 0:
            return t
    # TODO(synk): pad / mask a partial trailing tile for awkward n instead of a full block.
    return n


# ---------------------------------------------------------------------------
# Kernel 1: QKV projection (bf16 MXU operands, f32 accumulation, bf16 activations out)
# ---------------------------------------------------------------------------
def _qkv_proj_self_kernel(x_ref, w_ref, b_ref, qo_ref, ko_ref, vo_ref):
    """Self-attention: ONE fused (Tm, D) @ (D, 3D) matmul; shared input DMA'd once."""
    d = qo_ref.shape[-1]
    x = x_ref[...].astype(jnp.bfloat16)
    y = jnp.dot(x, w_ref[...], preferred_element_type=jnp.float32) + b_ref[...]
    qo_ref[...] = y[:, 0:d].astype(qo_ref.dtype)
    ko_ref[...] = y[:, d:2 * d].astype(ko_ref.dtype)
    vo_ref[...] = y[:, 2 * d:3 * d].astype(vo_ref.dtype)


def _qkv_proj_cross_kernel(q_ref, k_ref, v_ref, w_ref, b_ref, qo_ref, ko_ref, vo_ref):
    """Cross-attention: three (Tm, D) @ (D, D) matmuls off one packed weight stream."""
    d = qo_ref.shape[-1]
    w = w_ref[...]
    b = b_ref[...]

    def proj(x_ref, lo):
        x = x_ref[...].astype(jnp.bfloat16)
        return jnp.dot(x, w[:, lo:lo + d],
                       preferred_element_type=jnp.float32) + b[:, lo:lo + d]

    qo_ref[...] = proj(q_ref, 0).astype(qo_ref.dtype)
    ko_ref[...] = proj(k_ref, d).astype(ko_ref.dtype)
    vo_ref[...] = proj(v_ref, 2 * d).astype(vo_ref.dtype)


def _project_qkv(q, k, v, w_qkv, b_qkv, *, fused, act_dtype=jnp.bfloat16, max_row_tile=256):
    """Project q/k/v once.  Returns (qp, kp, vp) as (B, T, D) bf16 activations."""
    B, T, D = q.shape
    M = B * T
    tm = _pick_tile(M, max_row_tile)
    grid = (M // tm,)

    row_spec = pl.BlockSpec((tm, D), lambda i: (i, 0))
    # Constant-index operands: single-buffered (no wasted second pipeline buffer).
    w_spec = pl.BlockSpec((D, 3 * D), lambda i: (0, 0), pipeline_mode=pl.Buffered(1))
    b_spec = pl.BlockSpec((1, 3 * D), lambda i: (0, 0), pipeline_mode=pl.Buffered(1))

    out_shape = tuple(jax.ShapeDtypeStruct((M, D), act_dtype) for _ in range(3))
    out_specs = (row_spec, row_spec, row_spec)

    if fused:
        kernel = _qkv_proj_self_kernel
        in_specs = [row_spec, w_spec, b_spec]
        args = (q.reshape(M, D), w_qkv, b_qkv)
    else:
        kernel = _qkv_proj_cross_kernel
        in_specs = [row_spec, row_spec, row_spec, w_spec, b_spec]
        args = (q.reshape(M, D), k.reshape(M, D), v.reshape(M, D), w_qkv, b_qkv)

    qp, kp, vp = pl.pallas_call(
        kernel,
        out_shape=out_shape,
        grid_spec=pltpu.PrefetchScalarGridSpec(
            num_scalar_prefetch=0, grid=grid, in_specs=in_specs, out_specs=out_specs),
        compiler_params=pltpu.CompilerParams(
            dimension_semantics=("parallel",),
            vmem_limit_bytes=_VMEM_LIMIT_BYTES),
    )(*args)
    return qp.reshape(B, T, D), kp.reshape(B, T, D), vp.reshape(B, T, D)


# ---------------------------------------------------------------------------
# Kernel 2: flash-style attention + output projection
# ---------------------------------------------------------------------------
def _flash_attn_kernel(q_ref, k_ref, v_ref, wo_ref, bo_ref, o_ref,
                       m_sc, l_sc, acc_sc, *, num_heads, d_k, approx_recip):
    j = pl.program_id(2)

    @pl.when(j == 0)
    def _():
        m_sc[...] = jnp.full(m_sc.shape, -jnp.inf, dtype=jnp.float32)
        l_sc[...] = jnp.zeros(l_sc.shape, dtype=jnp.float32)
        acc_sc[...] = jnp.zeros(acc_sc.shape, dtype=jnp.float32)

    q = q_ref[0]   # (Tq,  D) bf16; 1/sqrt(d_k) already folded into the Q weights
    k = k_ref[0]   # (Tkv, D) bf16
    v = v_ref[0]   # (Tkv, D) bf16
    dn = (((1,), (1,)), ((), ()))  # contract last dims: q_h @ k_h^T without a transpose

    for h in range(num_heads):     # static unroll; num_heads is small
        lo = h * d_k
        q_h = q[:, lo:lo + d_k]
        k_h = k[:, lo:lo + d_k]
        v_h = v[:, lo:lo + d_k]

        # bf16 MXU operands, f32 accumulation
        s = lax.dot_general(q_h, k_h, dn, preferred_element_type=jnp.float32)  # (Tq, Tkv)

        # online softmax (numerically stable across KV tiles)
        m_prev = m_sc[h]                                                # (Tq, 1)
        m_new = jnp.maximum(m_prev, jnp.max(s, axis=-1, keepdims=True))
        alpha = jnp.exp(m_prev - m_new)                                 # (Tq, 1)
        p = jnp.exp(s - m_new)                                          # (Tq, Tkv) f32

        l_sc[h] = alpha * l_sc[h] + jnp.sum(p, axis=-1, keepdims=True)
        acc_sc[:, lo:lo + d_k] = alpha * acc_sc[:, lo:lo + d_k] + jnp.dot(
            p.astype(jnp.bfloat16), v_h, preferred_element_type=jnp.float32)
        m_sc[h] = m_new

    @pl.when(j == pl.num_programs(2) - 1)
    def _():
        # Normalize each head's slice in-place, then ONE full-depth output projection.
        for h in range(num_heads):
            lo = h * d_k
            inv = pl.reciprocal(l_sc[h], approx=approx_recip)           # (Tq, 1), EUP
            acc_sc[:, lo:lo + d_k] = acc_sc[:, lo:lo + d_k] * inv
        ctx = acc_sc[...].astype(jnp.bfloat16)                          # (Tq, D)
        out = jnp.dot(ctx, wo_ref[...], preferred_element_type=jnp.float32) + bo_ref[...]
        o_ref[0] = out.astype(o_ref.dtype)


def _attention(qp, kp, vp, wo, bo, *, num_heads, out_dtype, q_block, kv_block,
               approx_recip=True):
    B, T, D = qp.shape
    Tkv = kp.shape[1]
    d_k = D // num_heads
    assert T % q_block == 0, "q_block must divide the (query) sequence length"
    assert Tkv % kv_block == 0, "kv_block must divide the (key/value) sequence length"
    nq = T // q_block
    nkv = Tkv // kv_block

    kernel = functools.partial(_flash_attn_kernel, num_heads=num_heads, d_k=d_k,
                               approx_recip=approx_recip)
    return pl.pallas_call(
        kernel,
        out_shape=jax.ShapeDtypeStruct((B, T, D), out_dtype),
        grid_spec=pltpu.PrefetchScalarGridSpec(
            num_scalar_prefetch=0,
            grid=(B, nq, nkv),
            in_specs=[
                pl.BlockSpec((1, q_block, D), lambda b, i, j: (b, i, 0)),
                pl.BlockSpec((1, kv_block, D), lambda b, i, j: (b, j, 0)),
                pl.BlockSpec((1, kv_block, D), lambda b, i, j: (b, j, 0)),
                # Constant-index weights/biases: single-buffered.
                pl.BlockSpec((D, D), lambda b, i, j: (0, 0), pipeline_mode=pl.Buffered(1)),
                pl.BlockSpec((1, D), lambda b, i, j: (0, 0), pipeline_mode=pl.Buffered(1)),
            ],
            out_specs=pl.BlockSpec((1, q_block, D), lambda b, i, j: (b, i, 0)),
            scratch_shapes=[
                pltpu.VMEM((num_heads, q_block, 1), jnp.float32),  # running row max
                pltpu.VMEM((num_heads, q_block, 1), jnp.float32),  # running row sum
                pltpu.VMEM((q_block, D), jnp.float32),             # unnormalized context
            ]),
        compiler_params=pltpu.CompilerParams(
            dimension_semantics=("parallel", "parallel", "arbitrary"),
            vmem_limit_bytes=_VMEM_LIMIT_BYTES),
    )(qp, kp, vp, wo, bo)


# ---------------------------------------------------------------------------
# Public wrapper
# ---------------------------------------------------------------------------
def multi_head_attention(q, k, v, packed_params, *, num_heads,
                         fuse_qkv=None, q_block=None, kv_block=None,
                         max_q_block=256, max_kv_block=512, approx_recip=True):
    """q, k, v: (B, T, D).  packed_params: output of pack_params().  mask=None only.

    fuse_qkv: None -> auto (q is k is v).  Pass True explicitly for equal-but-distinct
    self-attention inputs (the identity test is a dispatch heuristic, not a numerics issue).
    """
    # TODO(synk): optional attention mask (masked_fill with -1e9) not implemented.
    B, T, D = q.shape
    assert D % num_heads == 0, "d_model must be divisible by num_heads"
    if fuse_qkv is None:
        fuse_qkv = (q is k) and (k is v)

    qp, kp, vp = _project_qkv(q, k, v, packed_params["w_qkv"], packed_params["b_qkv"],
                              fused=fuse_qkv)

    if q_block is None:
        q_block = _pick_tile(T, max_q_block)
    if kv_block is None:
        kv_block = _pick_tile(T, max_kv_block)

    return _attention(qp, kp, vp, packed_params["wo"], packed_params["bo"],
                      num_heads=num_heads, out_dtype=q.dtype,
                      q_block=q_block, kv_block=kv_block, approx_recip=approx_recip)


def pack_params(params, *, num_heads):
    """Pack / pre-scale projection weights ONCE (not per forward call).

    * Q/K/V weights concatenated into one (D, 3D) bf16 stream (biases into (1, 3D) f32).
    * The 1/sqrt(d_k) attention scale is folded into the Q projection (zero runtime cost).
    * Weights stored bf16 so the MXU gets native bf16 operands; kernels accumulate in f32.
    """
    d_model = params["wq"].shape[0]
    scale = 1.0 / math.sqrt(d_model // num_heads)
    w_qkv = jnp.concatenate([params["wq"] * scale, params["wk"], params["wv"]],
                            axis=1).astype(jnp.bfloat16)
    b_qkv = jnp.concatenate([params["bq"] * scale, params["bk"], params["bv"]],
                            axis=1).astype(jnp.float32)
    return {
        "w_qkv": w_qkv,
        "b_qkv": b_qkv,
        "wo": params["wo"].astype(jnp.bfloat16),
        "bo": params["bo"].astype(jnp.float32),
    }


# ---------------------------------------------------------------------------
# Plain-JAX reference & init (f32, mirrors the PyTorch forward with mask=None)
# ---------------------------------------------------------------------------
def reference_mha(q, k, v, params, *, num_heads):
    B, T, D = q.shape
    d_k = D // num_heads

    def lin(x, w, b):
        return x @ w + b

    qp = lin(q, params["wq"], params["bq"]).reshape(B, T, num_heads, d_k).transpose(0, 2, 1, 3)
    kp = lin(k, params["wk"], params["bk"]).reshape(B, T, num_heads, d_k).transpose(0, 2, 1, 3)
    vp = lin(v, params["wv"], params["bv"]).reshape(B, T, num_heads, d_k).transpose(0, 2, 1, 3)

    scores = jnp.einsum("bhtd,bhsd->bhts", qp, kp) / math.sqrt(d_k)
    attn = jax.nn.softmax(scores, axis=-1)
    ctx = jnp.einsum("bhts,bhsd->bhtd", attn, vp)
    ctx = ctx.transpose(0, 2, 1, 3).reshape(B, T, D)
    return lin(ctx, params["wo"], params["bo"])


def init_params(key, d_model):
    """Deterministic init mimicking torch.nn.Linear (uniform +/- 1/sqrt(fan_in))."""
    bound = 1.0 / math.sqrt(d_model)
    keys = jax.random.split(key, 8)

    def u(kk, shape):
        return jax.random.uniform(kk, shape, jnp.float32, -bound, bound)

    return {
        "wq": u(keys[0], (d_model, d_model)), "bq": u(keys[1], (1, d_model)),
        "wk": u(keys[2], (d_model, d_model)), "bk": u(keys[3], (1, d_model)),
        "wv": u(keys[4], (d_model, d_model)), "bv": u(keys[5], (1, d_model)),
        "wo": u(keys[6], (d_model, d_model)), "bo": u(keys[7], (1, d_model)),
    }


if __name__ == "__main__":
    B, T, D, H = 2, 8, 32, 4

    key = jax.random.PRNGKey(0)
    kq, kk, kv_, kp = jax.random.split(key, 4)
    q = jax.random.normal(kq, (B, T, D), jnp.float32)
    k = jax.random.normal(kk, (B, T, D), jnp.float32)
    v = jax.random.normal(kv_, (B, T, D), jnp.float32)
    params = init_params(kp, D)
    packed = pack_params(params, num_heads=H)   # packed once, reused every forward

    # Tolerances sized for bf16 MXU operands (f32 accumulation) + EUP approx reciprocal.
    ATOL = RTOL = 3e-2

    # 1) Cross-attention path: distinct q/k/v.
    out = jax.block_until_ready(multi_head_attention(q, k, v, packed, num_heads=H))
    ref = reference_mha(q, k, v, params, num_heads=H)
    assert out.shape == (B, T, D)
    assert jnp.allclose(out, ref, atol=ATOL, rtol=RTOL), "cross-attn mismatch vs reference"

    # 2) Self-attention path: fused (D, 3D) QKV projection.
    out_s = jax.block_until_ready(multi_head_attention(q, q, q, packed, num_heads=H))
    ref_s = reference_mha(q, q, q, params, num_heads=H)
    assert out_s.shape == (B, T, D)
    assert jnp.allclose(out_s, ref_s, atol=ATOL, rtol=RTOL), "self-attn mismatch vs reference"

    # 3) Flash path: force query + KV tiling (nq = 2, nkv = 2) on a longer sequence so
    #    the online-softmax accumulation across KV grid steps is exercised.
    T2 = 16
    kq2, kk2, kv2 = jax.random.split(jax.random.PRNGKey(1), 3)
    q2 = jax.random.normal(kq2, (B, T2, D), jnp.float32)
    k2 = jax.random.normal(kk2, (B, T2, D), jnp.float32)
    v2 = jax.random.normal(kv2, (B, T2, D), jnp.float32)
    out_f = jax.block_until_ready(
        multi_head_attention(q2, k2, v2, packed, num_heads=H, q_block=8, kv_block=8))
    ref_f = reference_mha(q2, k2, v2, params, num_heads=H)
    assert out_f.shape == (B, T2, D)
    assert jnp.allclose(out_f, ref_f, atol=ATOL, rtol=RTOL), "flash-tiled mismatch vs reference"

    print("KERNEL_OK")
</pallas_src>

<mosaic_0001>
module attributes {stable_mosaic.version = 11 : i64} {
  func.func @_qkv_proj_cross_kernel(%arg0: i32, %arg1: memref<16x32xf32, #tpu.memory_space<vmem>>, %arg2: memref<16x32xf32, #tpu.memory_space<vmem>>, %arg3: memref<16x32xf32, #tpu.memory_space<vmem>>, %arg4: memref<32x96xbf16, #tpu.memory_space<vmem>>, %arg5: memref<1x96xf32, #tpu.memory_space<vmem>>, %arg6: memref<16x32xbf16, #tpu.memory_space<vmem>>, %arg7: memref<16x32xbf16, #tpu.memory_space<vmem>>, %arg8: memref<16x32xbf16, #tpu.memory_space<vmem>>) attributes {dimension_semantics = [#tpu.dimension_semantics<parallel>], iteration_bounds = array<i64: 1>, scalar_prefetch = 0 : i64, scratch_operands = 0 : i64, tpu.core_type = #tpu.core_type<tc>, window_params = [{transform_indices = @transform_0, window_bounds = array<i64: 16, 32>}, {transform_indices = @transform_1, window_bounds = array<i64: 16, 32>}, {transform_indices = @transform_2, window_bounds = array<i64: 16, 32>}, {pipeline_mode = #tpu.pipeline_mode<synchronous>, transform_indices = @transform_3, window_bounds = array<i64: 32, 96>}, {pipeline_mode = #tpu.pipeline_mode<synchronous>, transform_indices = @transform_4, window_bounds = array<i64: 1, 96>}, {transform_indices = @transform_5, window_bounds = array<i64: 16, 32>}, {transform_indices = @transform_6, window_bounds = array<i64: 16, 32>}, {transform_indices = @transform_7, window_bounds = array<i64: 16, 32>}]} {
    %c0 = arith.constant 0 : index
    %c0_0 = arith.constant 0 : index
    %0 = vector.load %arg4[%c0, %c0_0] : memref<32x96xbf16, #tpu.memory_space<vmem>>, vector<32x96xbf16>
    %c0_1 = arith.constant 0 : index
    %c0_2 = arith.constant 0 : index
    %1 = vector.load %arg5[%c0_1, %c0_2] : memref<1x96xf32, #tpu.memory_space<vmem>>, vector<1x96xf32>
    %c0_3 = arith.constant 0 : index
    %c0_4 = arith.constant 0 : index
    %2 = vector.load %arg1[%c0_3, %c0_4] : memref<16x32xf32, #tpu.memory_space<vmem>>, vector<16x32xf32>
    %3 = arith.truncf %2 : vector<16x32xf32> to vector<16x32xbf16>
    %4 = vector.extract_strided_slice %0 {offsets = [0, 0], sizes = [32, 32], strides = [1, 1]} : vector<32x96xbf16> to vector<32x32xbf16>
    %cst = arith.constant dense<0.000000e+00> : vector<16x32xf32>
    %5 = tpu.matmul %3, %4, %cst {dimension_numbers = #tpu.dot_dimension_numbers<[1], [0], [0], [1], [0, 0, 1, 1], [], []>} : vector<16x32xbf16>, vector<32x32xbf16>, vector<16x32xf32> -> vector<16x32xf32>
    %6 = vector.extract_strided_slice %1 {offsets = [0, 0], sizes = [1, 32], strides = [1, 1]} : vector<1x96xf32> to vector<1x32xf32>
    %7 = vector.broadcast %6 : vector<1x32xf32> to vector<16x32xf32>
    %8 = arith.addf %5, %7 : vector<16x32xf32>
    %9 = arith.truncf %8 : vector<16x32xf32> to vector<16x32xbf16>
    %c0_5 = arith.constant 0 : index
    %c0_6 = arith.constant 0 : index
    %10 = vector.load %arg6[%c0_5, %c0_6] : memref<16x32xbf16, #tpu.memory_space<vmem>>, vector<16x32xbf16>
    tpu.vector_store %arg6[%c0_5, %c0_6], %9 {strides = array<i32>} : memref<16x32xbf16, #tpu.memory_space<vmem>>, vector<16x32xbf16>,
    %c0_7 = arith.constant 0 : index
    %c0_8 = arith.constant 0 : index
    %11 = vector.load %arg2[%c0_7, %c0_8] : memref<16x32xf32, #tpu.memory_space<vmem>>, vector<16x32xf32>
    %12 = arith.truncf %11 : vector<16x32xf32> to vector<16x32xbf16>
    %13 = vector.extract_strided_slice %0 {offsets = [0, 32], sizes = [32, 32], strides = [1, 1]} : vector<32x96xbf16> to vector<32x32xbf16>
    %cst_9 = arith.constant dense<0.000000e+00> : vector<16x32xf32>
    %14 = tpu.matmul %12, %13, %cst_9 {dimension_numbers = #tpu.dot_dimension_numbers<[1], [0], [0], [1], [0, 0, 1, 1], [], []>} : vector<16x32xbf16>, vector<32x32xbf16>, vector<16x32xf32> -> vector<16x32xf32>
    %15 = vector.extract_strided_slice %1 {offsets = [0, 32], sizes = [1, 32], strides = [1, 1]} : vector<1x96xf32> to vector<1x32xf32>
    %16 = vector.broadcast %15 : vector<1x32xf32> to vector<16x32xf32>
    %17 = arith.addf %14, %16 : vector<16x32xf32>
    %18 = arith.truncf %17 : vector<16x32xf32> to vector<16x32xbf16>
    %c0_10 = arith.constant 0 : index
    %c0_11 = arith.constant 0 : index
    %19 = vector.load %arg7[%c0_10, %c0_11] : memref<16x32xbf16, #tpu.memory_space<vmem>>, vector<16x32xbf16>
    tpu.vector_store %arg7[%c0_10, %c0_11], %18 {strides = array<i32>} : memref<16x32xbf16, #tpu.memory_space<vmem>>, vector<16x32xbf16>,
    %c0_12 = arith.constant 0 : index
    %c0_13 = arith.constant 0 : index
    %20 = vector.load %arg3[%c0_12, %c0_13] : memref<16x32xf32, #tpu.memory_space<vmem>>, vector<16x32xf32>
    %21 = arith.truncf %20 : vector<16x32xf32> to vector<16x32xbf16>
    %22 = vector.extract_strided_slice %0 {offsets = [0, 64], sizes = [32, 32], strides = [1, 1]} : vector<32x96xbf16> to vector<32x32xbf16>
    %cst_14 = arith.constant dense<0.000000e+00> : vector<16x32xf32>
    %23 = tpu.matmul %21, %22, %cst_14 {dimension_numbers = #tpu.dot_dimension_numbers<[1], [0], [0], [1], [0, 0, 1, 1], [], []>} : vector<16x32xbf16>, vector<32x32xbf16>, vector<16x32xf32> -> vector<16x32xf32>
    %24 = vector.extract_strided_slice %1 {offsets = [0, 64], sizes = [1, 32], strides = [1, 1]} : vector<1x96xf32> to vector<1x32xf32>
    %25 = vector.broadcast %24 : vector<1x32xf32> to vector<16x32xf32>
    %26 = arith.addf %23, %25 : vector<16x32xf32>
    %27 = arith.truncf %26 : vector<16x32xf32> to vector<16x32xbf16>
    %c0_15 = arith.constant 0 : index
    %c0_16 = arith.constant 0 : index
    %28 = vector.load %arg8[%c0_15, %c0_16] : memref<16x32xbf16, #tpu.memory_space<vmem>>, vector<16x32xbf16>
    tpu.vector_store %arg8[%c0_15, %c0_16], %27 {strides = array<i32>} : memref<16x32xbf16, #tpu.memory_space<vmem>>, vector<16x32xbf16>,
    return
  }
  func.func @transform_0(%arg0: i32) -> (i32, i32) {
    %c0_i32 = arith.constant 0 : i32
    %c0_i32_0 = arith.constant 0 : i32
    return %arg0, %c0_i32 : i32, i32
  }
  func.func @transform_1(%arg0: i32) -> (i32, i32) {
    %c0_i32 = arith.constant 0 : i32
    %c0_i32_0 = arith.constant 0 : i32
    return %arg0, %c0_i32 : i32, i32
  }
  func.func @transform_2(%arg0: i32) -> (i32, i32) {
    %c0_i32 = arith.constant 0 : i32
    %c0_i32_0 = arith.constant 0 : i32
    return %arg0, %c0_i32 : i32, i32
  }
  func.func @transform_3(%arg0: i32) -> (i32, i32) {
    %c0_i32 = arith.constant 0 : i32
    %c0_i32_0 = arith.constant 0 : i32
    %c0_i32_1 = arith.constant 0 : i32
    return %c0_i32, %c0_i32_0 : i32, i32
  }
  func.func @transform_4(%arg0: i32) -> (i32, i32) {
    %c0_i32 = arith.constant 0 : i32
    %c0_i32_0 = arith.constant 0 : i32
    %c0_i32_1 = arith.constant 0 : i32
    return %c0_i32, %c0_i32_0 : i32, i32
  }
  func.func @transform_5(%arg0: i32) -> (i32, i32) {
    %c0_i32 = arith.constant 0 : i32
    %c0_i32_0 = arith.constant 0 : i32
    return %arg0, %c0_i32 : i32, i32
  }
  func.func @transform_6(%arg0: i32) -> (i32, i32) {
    %c0_i32 = arith.constant 0 : i32
    %c0_i32_0 = arith.constant 0 : i32
    return %arg0, %c0_i32 : i32, i32
  }
  func.func @transform_7(%arg0: i32) -> (i32, i32) {
    %c0_i32 = arith.constant 0 : i32
    %c0_i32_0 = arith.constant 0 : i32
    return %arg0, %c0_i32 : i32, i32
  }
}

</mosaic_0001>

<llo_original>
// kernel: tpu_custom_call.1
$region0: #{tpu_custom_call.1}
  #allocation0 [shape = 'u32[]', space=smem, size = 0x4, offset = 0x4, fixed_abs, tag = 'smem constant byte address 0x4 - core index']
  #allocation1 [shape = 'u32[72,128]{1,0:T(1,128)}', space=vmem, size = 0x9000, scoped, tag = 'internal scratch']
  %s0 = inlined_call_operand.hbm [shape: f32[16,32], index: 0, kind: input, shape index: {}]
  %s1 = inlined_call_operand.hbm [shape: f32[16,32], index: 1, kind: input, shape index: {}]
  %s2 = inlined_call_operand.hbm [shape: f32[16,32], index: 2, kind: input, shape index: {}]
  %s3 = inlined_call_operand.hbm [shape: bf16[32,96], index: 3, kind: input, shape index: {}]
  %s4 = inlined_call_operand.vmem [shape: f32[1,96], index: 4, kind: input, shape index: {}]
  %s5 = inlined_call_operand.hbm [shape: bf16[16,32], index: 5, kind: output, shape index: {0}]
  %s6 = inlined_call_operand.hbm [shape: bf16[16,32], index: 6, kind: output, shape index: {1}]
  %s7 = inlined_call_operand.hbm [shape: bf16[16,32], index: 7, kind: output, shape index: {2}]
  %8 = xla_tuple %s5, %s6, %s7
  %s9 = sld [smem:[#allocation0]]
  $region62: #{tpu_custom_call.1} parent=0
    _
  %s11 = ssub.s32 1, %s9
  %s12 = scalar_select 0, %s11, %s9
  $region1: #{tpu_custom_call.1} parent=0
    #allocation2 [shape = 'u8[8192]{0}', space=vmem, size = 0x2000, scoped, tag = 'input window, operand 0, single buffered']
    #allocation3 [shape = 's32[1]{0}', space=sflag, size = 0x4, scoped, tag = 'scoped memory for tpu_custom_call.1']
    #allocation4 [shape = 's32[1]{0}', space=sflag, size = 0x4, scoped, tag = 'scoped memory for tpu_custom_call.1']
    #allocation5 [shape = 'u8[8192]{0}', space=vmem, size = 0x2000, scoped, tag = 'input window, operand 1, single buffered']
    #allocation6 [shape = 's32[1]{0}', space=sflag, size = 0x4, scoped, tag = 'scoped memory for tpu_custom_call.1']
    #allocation7 [shape = 'u8[8192]{0}', space=vmem, size = 0x2000, scoped, tag = 'input window, operand 2, single buffered']
    #allocation8 [shape = 'u8[8192]{0}', space=vmem, size = 0x2000, scoped, tag = 'input window, operand 3, single buffered']
    #allocation9 [shape = 's32[1]{0}', space=sflag, size = 0x4, scoped, tag = 'scoped memory for tpu_custom_call.1']
    #allocation10 [shape = 'u8[4096]{0}', space=vmem, size = 0x1000, scoped, tag = 'output window, operand 0, single buffered']
    #allocation11 [shape = 'u8[4096]{0}', space=vmem, size = 0x1000, scoped, tag = 'output window, operand 1, single buffered']
    #allocation12 [shape = 's32[1]{0}', space=sflag, size = 0x4, scoped, tag = 'scoped memory for tpu_custom_call.1']
    #allocation13 [shape = 'u8[4096]{0}', space=vmem, size = 0x1000, scoped, tag = 'output window, operand 2, single buffered']
    %13 = vsyncpa [#allocation3], 0
    %14 = vsyncpa [#allocation6], 0
    %15 = vsyncpa [#allocation9], 0
    %16 = vsyncpa [#allocation4], 0
    %17 = vsyncpa [#allocation12], 0
    // Predicated region
    $region2: #{tpu_custom_call.1} parent=1 // pred_check
      _
    $region3: #{tpu_custom_call.1} parent=1 // pred_check_branch
      %19 = sbr.rel (0) target = $region5
    $region4: #{tpu_custom_call.1} parent=1 // pred_region
      %21 = vsyncadd [#allocation3], 0
      %s22 = sshll.u32 %s0, 4
      %s23 = int_to_ptr.hbm [resolvable:$true] %s22
      %s24 = sshll.u32 [#allocation2], 4
      %s25 = int_to_ptr.vmem [resolvable:$true] %s24
      %30 = dma.hbm_to_vmem [thread:$0]  %s23, 256, %s25, [#allocation3], 128, 128, 8
    $region5: #{tpu_custom_call.1} parent=1 // pred_fallthru
      _
    // Predicated region
    $region6: #{tpu_custom_call.1} parent=1 // pred_check
      _
    $region7: #{tpu_custom_call.1} parent=1 // pred_check_branch
      %32 = sbr.rel (0) target = $region9
    $region8: #{tpu_custom_call.1} parent=1 // pred_region
      %34 = vsyncadd [#allocation6], 0
      %s35 = sshll.u32 %s1, 4
      %s36 = int_to_ptr.hbm [resolvable:$true] %s35
      %s37 = sshll.u32 [#allocation5], 4
      %s38 = int_to_ptr.vmem [resolvable:$true] %s37
      %43 = dma.hbm_to_vmem [thread:$0]  %s36, 256, %s38, [#allocation6], 128, 128, 8
    $region9: #{tpu_custom_call.1} parent=1 // pred_fallthru
      _
    // Predicated region
    $region10: #{tpu_custom_call.1} parent=1 // pred_check
      _
    $region11: #{tpu_custom_call.1} parent=1 // pred_check_branch
      %45 = sbr.rel (0) target = $region13
    $region12: #{tpu_custom_call.1} parent=1 // pred_region
      %47 = vsyncadd [#allocation6], 0
      %s48 = sshll.u32 %s2, 4
      %s49 = int_to_ptr.hbm [resolvable:$true] %s48
      %s50 = sshll.u32 [#allocation7], 4
      %s51 = int_to_ptr.vmem [resolvable:$true] %s50
      %56 = dma.hbm_to_vmem [thread:$0]  %s49, 256, %s51, [#allocation6], 128, 128, 8
    $region13: #{tpu_custom_call.1} parent=1 // pred_fallthru
      _
    // Predicated region
    $region14: #{tpu_custom_call.1} parent=1 // pred_check
      _
    $region15: #{tpu_custom_call.1} parent=1 // pred_check_branch
      %58 = sbr.rel (0) target = $region17
    $region16: #{tpu_custom_call.1} parent=1 // pred_region
      %60 = vsyncadd [#allocation9], 0
      %s61 = sshll.u32 %s3, 4
      %s62 = int_to_ptr.hbm [resolvable:$true] %s61
      %s63 = sshll.u32 [#allocation8], 4
      %s64 = int_to_ptr.vmem [resolvable:$true] %s63
      %69 = dma.hbm_to_vmem [thread:$0]  %s62, 256, %s64, [#allocation9], 64, 64, 4
    $region17: #{tpu_custom_call.1} parent=1 // pred_fallthru
      _
    // Predicated region
    $region18: #{tpu_custom_call.1} parent=1 // pred_check
      _
    $region19: #{tpu_custom_call.1} parent=1 // pred_check_branch
      %71 = sbr.rel (0) target = $region21
    $region20: #{tpu_custom_call.1} parent=1 // pred_region
      _
    $region21: #{tpu_custom_call.1} parent=1 // pred_fallthru
      _
    // Predicated region
    $region22: #{tpu_custom_call.1} parent=1 // pred_check
      _
    $region23: #{tpu_custom_call.1} parent=1 // pred_check_branch
      %73 = sbr.rel (0) target = $region25
    $region24: #{tpu_custom_call.1} parent=1 // pred_region
      %75 = dma.done [#allocation3], 256
    $region25: #{tpu_custom_call.1} parent=1 // pred_fallthru
      _
    // Predicated region
    $region26: #{tpu_custom_call.1} parent=1 // pred_check
      _
    $region27: #{tpu_custom_call.1} parent=1 // pred_check_branch
      %77 = sbr.rel (0) target = $region29
    $region28: #{tpu_custom_call.1} parent=1 // pred_region
      %79 = dma.done [#allocation6], 256
    $region29: #{tpu_custom_call.1} parent=1 // pred_fallthru
      _
    // Predicated region
    $region30: #{tpu_custom_call.1} parent=1 // pred_check
      _
    $region31: #{tpu_custom_call.1} parent=1 // pred_check_branch
      %81 = sbr.rel (0) target = $region33
    $region32: #{tpu_custom_call.1} parent=1 // pred_region
      %83 = dma.done [#allocation6], 256
    $region33: #{tpu_custom_call.1} parent=1 // pred_fallthru
      _
    // Predicated region
    $region34: #{tpu_custom_call.1} parent=1 // pred_check
      _
    $region35: #{tpu_custom_call.1} parent=1 // pred_check_branch
      %85 = sbr.rel (0) target = $region37
    $region36: #{tpu_custom_call.1} parent=1 // pred_region
      %87 = dma.done [#allocation9], 256
    $region37: #{tpu_custom_call.1} parent=1 // pred_fallthru
      _
    %v89 = vld [vmem:[#allocation8] sm:$0xf]
    %v90 = vld [vmem:[#allocation8 + $0x4] sm:$0xf]
    %v91 = vld [vmem:[#allocation8 + $0x8] sm:$0xf]
    %v92 = vld [vmem:[#allocation8 + $0xc] sm:$0xf]
    %v93 = vld [vmem:[%s4] sm:$0x1]
    %v94 = vld [vmem:[#allocation2] sm:$0xff]
    %v95 = vld [vmem:[#allocation2 + $0x8] sm:$0xff]
    %v96 = vpack.c.bf16 %v95, %v94
    %v98 = vperm.slane %v93, 0
    %v104 = vunpack.c.l.b16 %v89
    %v105 = vunpack.c.l.b16 %v90
    %v106 = vunpack.c.l.b16 %v91
    %v107 = vunpack.c.l.b16 %v92
    %v108 = vpack.c.b16 %v105, %v104
    %v109 = vpack.c.b16 %v107, %v106
    %vm112 = vcmask 261120
    %v114 = vsel %vm112, %v96, 0
    %116 = vmatpush.bf16.msra.mxu0 0
    %117 = vmatpush.bf16.msra.mxu0 0
    %118 = vmatpush.bf16.msra.mxu0 0
    %119 = vmatpush.bf16.msra.mxu0 0
    %120 = vmatpush.bf16.msra.mxu0 0
    %121 = vmatpush.bf16.msra.mxu0 0
    %122 = vmatpush.bf16.msra.mxu0 %v109
    %123 = vmatpush.bf16.msra.mxu0 %v108
    %124 = vmatmul.bf16.gmra.mxu0 %v114
    %v125 = vpop.f32.mrf.mxu0
    %v126 = vadd.f32 %v98, %v125
    %v127 = vpop.f32.mrf.mxu0
    %v128 = vadd.f32 %v98, %v127
    %129 = vdwg.mxu0
    %v130 = vpack.c.bf16 %v126, %v126
    %v131 = vpack.c.bf16 %v128, %v128
    %vm132 = vcmask 257024
    %133 = vst.msk [vmem:[#allocation10] sm:$0xf] %vm132, %v130
    %134 = vst.msk [vmem:[#allocation10 + $0x4] sm:$0xf] %vm132, %v131
    %v135 = vld [vmem:[#allocation5] sm:$0xff]
    %v136 = vld [vmem:[#allocation5 + $0x8] sm:$0xff]
    %v137 = vpack.c.bf16 %v136, %v135
    %138 = vrot.lane.b32.xlu0 %v108, 96
    %v139 = vpop.permute.xlu0 %138
    %140 = vrot.lane.b32.xlu0 %v109, 96
    %v141 = vpop.permute.xlu0 %140
    %144 = vrot.lane.b32.xlu0 %v98, 96
    %v145 = vpop.permute.xlu0 %144
    %v148 = vsel %vm112, %v137, 0
    %150 = vmatpush.bf16.msra.mxu0 0
    %151 = vmatpush.bf16.msra.mxu0 0
    %152 = vmatpush.bf16.msra.mxu0 0
    %153 = vmatpush.bf16.msra.mxu0 0
    %154 = vmatpush.bf16.msra.mxu0 0
    %155 = vmatpush.bf16.msra.mxu0 0
    %156 = vmatpush.bf16.msra.mxu0 %v141
    %157 = vmatpush.bf16.msra.mxu0 %v139
    %158 = vmatmul.bf16.gmra.mxu0 %v148
    %v159 = vpop.f32.mrf.mxu0
    %v160 = vadd.f32 %v145, %v159
    %v161 = vpop.f32.mrf.mxu0
    %v162 = vadd.f32 %v145, %v161
    %163 = vdwg.mxu0
    %v164 = vpack.c.bf16 %v160, %v160
    %v165 = vpack.c.bf16 %v162, %v162
    %166 = vst.msk [vmem:[#allocation11] sm:$0xf] %vm132, %v164
    %167 = vst.msk [vmem:[#allocation11 + $0x4] sm:$0xf] %vm132, %v165
    %v168 = vld [vmem:[#allocation7] sm:$0xff]
    %v169 = vld [vmem:[#allocation7 + $0x8] sm:$0xff]
    %v170 = vpack.c.bf16 %v169, %v168
    %171 = vrot.lane.b32.xlu0 %v108, 64
    %v172 = vpop.permute.xlu0 %171
    %173 = vrot.lane.b32.xlu0 %v109, 64
    %v174 = vpop.permute.xlu0 %173
    %177 = vrot.lane.b32.xlu0 %v98, 64
    %v178 = vpop.permute.xlu0 %177
    %v181 = vsel %vm112, %v170, 0
    %183 = vmatpush.bf16.msra.mxu0 0
    %184 = vmatpush.bf16.msra.mxu0 0
    %185 = vmatpush.bf16.msra.mxu0 0
    %186 = vmatpush.bf16.msra.mxu0 0
    %187 = vmatpush.bf16.msra.mxu0 0
    %188 = vmatpush.bf16.msra.mxu0 0
    %189 = vmatpush.bf16.msra.mxu0 %v174
    %190 = vmatpush.bf16.msra.mxu0 %v172
    %191 = vmatmul.bf16.gmra.mxu0 %v181
    %v192 = vpop.f32.mrf.mxu0
    %v193 = vadd.f32 %v178, %v192
    %v194 = vpop.f32.mrf.mxu0
    %v195 = vadd.f32 %v178, %v194
    %196 = vdwg.mxu0
    %v197 = vpack.c.bf16 %v193, %v193
    %v198 = vpack.c.bf16 %v195, %v195
    %199 = vst.msk [vmem:[#allocation13] sm:$0xf] %vm132, %v197
    %200 = vst.msk [vmem:[#allocation13 + $0x4] sm:$0xf] %vm132, %v198
    // Predicated region
    $region38: #{tpu_custom_call.1} parent=1 // pred_check
      _
    $region39: #{tpu_custom_call.1} parent=1 // pred_check_branch
      %202 = sbr.rel (0) target = $region41
    $region40: #{tpu_custom_call.1} parent=1 // pred_region
      %204 = vsyncadd [#allocation4], 0
      %s205 = sshll.u32 [#allocation10], 4
      %s206 = int_to_ptr.vmem [resolvable:$true] %s205
      %s207 = sshll.u32 %s5, 4
      %s208 = int_to_ptr.hbm [resolvable:$true] %s207
      %213 = dma.vmem_to_hbm [thread:$0]  %s206, 128, %s208, [#allocation4], 64, 64, 4
    $region41: #{tpu_custom_call.1} parent=1 // pred_fallthru
      _
    // Predicated region
    $region42: #{tpu_custom_call.1} parent=1 // pred_check
      _
    $region43: #{tpu_custom_call.1} parent=1 // pred_check_branch
      %215 = sbr.rel (0) target = $region45
    $region44: #{tpu_custom_call.1} parent=1 // pred_region
      %217 = vsyncadd [#allocation12], 0
      %s218 = sshll.u32 [#allocation11], 4
      %s219 = int_to_ptr.vmem [resolvable:$true] %s218
      %s220 = sshll.u32 %s6, 4
      %s221 = int_to_ptr.hbm [resolvable:$true] %s220
      %226 = dma.vmem_to_hbm [thread:$0]  %s219, 128, %s221, [#allocation12], 64, 64, 4
    $region45: #{tpu_custom_call.1} parent=1 // pred_fallthru
      _
    // Predicated region
    $region46: #{tpu_custom_call.1} parent=1 // pred_check
      _
    $region47: #{tpu_custom_call.1} parent=1 // pred_check_branch
      %228 = sbr.rel (0) target = $region49
    $region48: #{tpu_custom_call.1} parent=1 // pred_region
      %230 = vsyncadd [#allocation12], 0
      %s231 = sshll.u32 [#allocation13], 4
      %s232 = int_to_ptr.vmem [resolvable:$true] %s231
      %s233 = sshll.u32 %s7, 4
      %s234 = int_to_ptr.hbm [resolvable:$true] %s233
      %239 = dma.vmem_to_hbm [thread:$0]  %s232, 128, %s234, [#allocation12], 64, 64, 4
    $region49: #{tpu_custom_call.1} parent=1 // pred_fallthru
      _
    // Predicated region
    $region50: #{tpu_custom_call.1} parent=1 // pred_check
      _
    $region51: #{tpu_custom_call.1} parent=1 // pred_check_branch
      %241 = sbr.rel (0) target = $region53
    $region52: #{tpu_custom_call.1} parent=1 // pred_region
      %243 = dma.done [#allocation4], 128
    $region53: #{tpu_custom_call.1} parent=1 // pred_fallthru
      _
    // Predicated region
    $region54: #{tpu_custom_call.1} parent=1 // pred_check
      _
    $region55: #{tpu_custom_call.1} parent=1 // pred_check_branch
      %245 = sbr.rel (0) target = $region57
    $region56: #{tpu_custom_call.1} parent=1 // pred_region
      %247 = dma.done [#allocation12], 128
    $region57: #{tpu_custom_call.1} parent=1 // pred_fallthru
      _
    // Predicated region
    $region58: #{tpu_custom_call.1} parent=1 // pred_check
      _
    $region59: #{tpu_custom_call.1} parent=1 // pred_check_branch
      %249 = sbr.rel (0) target = $region61
    $region60: #{tpu_custom_call.1} parent=1 // pred_region
      %251 = dma.done [#allocation12], 128
    $region61: #{tpu_custom_call.1} parent=1 // pred_fallthru
      _
    %252 = vsyncpa [#allocation3], 1
    %253 = vsyncpa [#allocation6], 1
    %254 = vsyncpa [#allocation9], 1
    %255 = vsyncpa [#allocation4], 1
    %256 = vsyncpa [#allocation12], 1

</llo_original>
